<compile_context>
chip_gen: v5e
topology: v5e:2x2
jax: 0.10.0
libtpu: 0.0.40
codegen_flags: <defaults>
</compile_context>

<pallas_src>
import numpy as np
import jax
import jax.numpy as jnp
from jax.experimental import pallas as pl
from jax.experimental.pallas import tpu as pltpu


def _wavg_kernel(w_ref, x_ref, o_ref):
    # w_ref: (1, N) f32, x_ref: (N, D) f32, o_ref: (1, D) f32
    # (1, N) @ (N, D) weighted-sum over the batch axis on the MXU.
    o_ref[...] = jnp.dot(w_ref[...], x_ref[...],
                         preferred_element_type=jnp.float32)


def weighted_average(imgs, weights):
    """imgs: (N, 3, 32, 32) float32, weights: (N,) float32 -> (1, 3, 32, 32)."""
    N = imgs.shape[0]
    C, H, W = imgs.shape[1:]
    D = C * H * W                          # 3 * 32 * 32 = 3072
    x = imgs.reshape(N, D).astype(jnp.float32)
    w = weights.reshape(1, N).astype(jnp.float32)

    # Whole problem fits comfortably in VMEM -> single block, no grid.
    out_flat = pl.pallas_call(
        _wavg_kernel,
        out_shape=jax.ShapeDtypeStruct((1, D), jnp.float32),
        in_specs=[
            pl.BlockSpec(memory_space=pltpu.MemorySpace.VMEM),   # weights (1, N)
            pl.BlockSpec(memory_space=pltpu.MemorySpace.VMEM),   # imgs    (N, D)
        ],
        out_specs=pl.BlockSpec(memory_space=pltpu.MemorySpace.VMEM),
    )(w, x)

    return out_flat.reshape(1, C, H, W)


def weighted_average_ref(imgs, weights):
    x = imgs.reshape(imgs.shape[0], -1)
    out = jnp.sum(x * weights.reshape(-1, 1), axis=0, keepdims=True)
    return out.reshape(1, 3, 32, 32)


if __name__ == "__main__":
    num_batches = 8                        # N
    key = jax.random.PRNGKey(0)
    imgs = jax.random.normal(key, (num_batches, 3, 32, 32), dtype=jnp.float32)

    # Deterministic parameter init, matching nn.Parameter(1/num_batches * ones(N)).
    weights = (1.0 / num_batches) * jnp.ones((num_batches,), dtype=jnp.float32)

    out = weighted_average(imgs, weights)
    out = jax.block_until_ready(out)

    ref = weighted_average_ref(imgs, weights)
    assert out.shape == (1, 3, 32, 32)
    np.testing.assert_allclose(np.asarray(out), np.asarray(ref),
                               rtol=1e-5, atol=1e-5)
    print("KERNEL_OK")
</pallas_src>

<mosaic_0001>
module attributes {stable_mosaic.version = 11 : i64} {
  func.func @_wavg_kernel(%arg0: memref<1x8xf32, #tpu.memory_space<vmem>>, %arg1: memref<8x3072xf32, #tpu.memory_space<vmem>>, %arg2: memref<1x3072xf32, #tpu.memory_space<vmem>>) attributes {dimension_semantics = [], scalar_prefetch = 0 : i64, scratch_operands = 0 : i64, tpu.core_type = #tpu.core_type<tc>} {
    %c0 = arith.constant 0 : index
    %c0_0 = arith.constant 0 : index
    %0 = vector.load %arg0[%c0, %c0_0] : memref<1x8xf32, #tpu.memory_space<vmem>>, vector<1x8xf32>
    %c0_1 = arith.constant 0 : index
    %c0_2 = arith.constant 0 : index
    %1 = vector.load %arg1[%c0_1, %c0_2] : memref<8x3072xf32, #tpu.memory_space<vmem>>, vector<8x3072xf32>
    %cst = arith.constant dense<0.000000e+00> : vector<1x3072xf32>
    %2 = tpu.matmul %0, %1, %cst {dimension_numbers = #tpu.dot_dimension_numbers<[1], [0], [0], [1], [0, 0, 1, 1], [], []>} : vector<1x8xf32>, vector<8x3072xf32>, vector<1x3072xf32> -> vector<1x3072xf32>
    %c0_3 = arith.constant 0 : index
    %c0_4 = arith.constant 0 : index
    %3 = vector.load %arg2[%c0_3, %c0_4] : memref<1x3072xf32, #tpu.memory_space<vmem>>, vector<1x3072xf32>
    tpu.vector_store %arg2[%c0_3, %c0_4], %2 {strides = array<i32>} : memref<1x3072xf32, #tpu.memory_space<vmem>>, vector<1x3072xf32>,
    return
  }
}

</mosaic_0001>

<llo_original>
// kernel: tpu_custom_call.1
$region0: #{tpu_custom_call.1}
  #allocation0 [shape = 'u32[]', space=smem, size = 0x4, offset = 0x4, fixed_abs, tag = 'smem constant byte address 0x4 - core index']
  #allocation1 [shape = 'u32[72,128]{1,0:T(1,128)}', space=vmem, size = 0x9000, scoped, tag = 'internal scratch']
  %s0 = inlined_call_operand.hbm [shape: f32[1,8], index: 0, kind: input, shape index: {}]
  %s1 = inlined_call_operand.hbm [shape: f32[8,3072], index: 1, kind: input, shape index: {}]
  %s2 = inlined_call_operand.hbm [shape: f32[1,3072], index: 2, kind: output, shape index: {}]
  %s3 = sld [smem:[#allocation0]]
  $region26: #{tpu_custom_call.1} parent=0
    _
  %s5 = ssub.s32 1, %s3
  %s6 = scalar_select 0, %s5, %s3
  $region1: #{tpu_custom_call.1} parent=0
    #allocation2 [shape = 'u8[512]{0}', space=vmem, size = 0x400, scoped, tag = 'input window, operand 0, single buffered']
    #allocation3 [shape = 's32[1]{0}', space=sflag, size = 0x4, scoped, tag = 'scoped memory for tpu_custom_call.1']
    #allocation4 [shape = 's32[1]{0}', space=sflag, size = 0x4, scoped, tag = 'scoped memory for tpu_custom_call.1']
    #allocation5 [shape = 'u8[98304]{0}', space=vmem, size = 0x18000, scoped, tag = 'input window, operand 1, single buffered']
    #allocation6 [shape = 's32[1]{0}', space=sflag, size = 0x4, scoped, tag = 'scoped memory for tpu_custom_call.1']
    #allocation7 [shape = 'u8[12288]{0}', space=vmem, size = 0x3000, scoped, tag = 'output window, operand 0, single buffered']
    %7 = vsyncpa [#allocation3], 0
    %8 = vsyncpa [#allocation6], 0
    %9 = vsyncpa [#allocation4], 0
    // Predicated region
    $region2: #{tpu_custom_call.1} parent=1 // pred_check
      _
    $region3: #{tpu_custom_call.1} parent=1 // pred_check_branch
      %11 = sbr.rel (0) target = $region5
    $region4: #{tpu_custom_call.1} parent=1 // pred_region
      %13 = vsyncadd [#allocation3], 0
      %s15 = sshll.u32 %s0, 4
      %s16 = int_to_ptr.hbm [resolvable:$true] %s15
      %s17 = sshll.u32 [#allocation2], 4
      %s18 = int_to_ptr.vmem [resolvable:$true] %s17
      %20 = dma.hbm_to_vmem [thread:$0]  %s16, 16, %s18, [#allocation3]
    $region5: #{tpu_custom_call.1} parent=1 // pred_fallthru
      _
    // Predicated region
    $region6: #{tpu_custom_call.1} parent=1 // pred_check
      _
    $region7: #{tpu_custom_call.1} parent=1 // pred_check_branch
      %22 = sbr.rel (0) target = $region9
    $region8: #{tpu_custom_call.1} parent=1 // pred_region
      %24 = vsyncadd [#allocation6], 0
      %s26 = sshll.u32 %s1, 4
      %s27 = int_to_ptr.hbm [resolvable:$true] %s26
      %s28 = sshll.u32 [#allocation5], 4
      %s29 = int_to_ptr.vmem [resolvable:$true] %s28
      %31 = dma.hbm_to_vmem [thread:$0]  %s27, 3072, %s29, [#allocation6]
    $region9: #{tpu_custom_call.1} parent=1 // pred_fallthru
      _
    // Predicated region
    $region10: #{tpu_custom_call.1} parent=1 // pred_check
      _
    $region11: #{tpu_custom_call.1} parent=1 // pred_check_branch
      %33 = sbr.rel (0) target = $region13
    $region12: #{tpu_custom_call.1} parent=1 // pred_region
      %35 = dma.done [#allocation3], 16
    $region13: #{tpu_custom_call.1} parent=1 // pred_fallthru
      _
    // Predicated region
    $region14: #{tpu_custom_call.1} parent=1 // pred_check
      _
    $region15: #{tpu_custom_call.1} parent=1 // pred_check_branch
      %37 = sbr.rel (0) target = $region17
    $region16: #{tpu_custom_call.1} parent=1 // pred_region
      %39 = dma.done [#allocation6], 3072
    $region17: #{tpu_custom_call.1} parent=1 // pred_fallthru
      _
    %v40 = vld [vmem:[#allocation2] sm:$0x1]
    %v41 = vld [vmem:[#allocation5] sm:$0xff]
    %v42 = vld [vmem:[#allocation5 + $0x8] sm:$0xff]
    %v43 = vld [vmem:[#allocation5 + $0x10] sm:$0xff]
    %v44 = vld [vmem:[#allocation5 + $0x18] sm:$0xff]
    %v45 = vld [vmem:[#allocation5 + $0x20] sm:$0xff]
    %v46 = vld [vmem:[#allocation5 + $0x28] sm:$0xff]
    %v47 = vld [vmem:[#allocation5 + $0x30] sm:$0xff]
    %v48 = vld [vmem:[#allocation5 + $0x38] sm:$0xff]
    %v49 = vld [vmem:[#allocation5 + $0x40] sm:$0xff]
    %v50 = vld [vmem:[#allocation5 + $0x48] sm:$0xff]
    %v51 = vld [vmem:[#allocation5 + $0x50] sm:$0xff]
    %v52 = vld [vmem:[#allocation5 + $0x58] sm:$0xff]
    %v53 = vld [vmem:[#allocation5 + $0x60] sm:$0xff]
    %v54 = vld [vmem:[#allocation5 + $0x68] sm:$0xff]
    %v55 = vld [vmem:[#allocation5 + $0x70] sm:$0xff]
    %v56 = vld [vmem:[#allocation5 + $0x78] sm:$0xff]
    %v57 = vld [vmem:[#allocation5 + $0x80] sm:$0xff]
    %v58 = vld [vmem:[#allocation5 + $0x88] sm:$0xff]
    %v59 = vld [vmem:[#allocation5 + $0x90] sm:$0xff]
    %v60 = vld [vmem:[#allocation5 + $0x98] sm:$0xff]
    %v61 = vld [vmem:[#allocation5 + $0xa0] sm:$0xff]
    %v62 = vld [vmem:[#allocation5 + $0xa8] sm:$0xff]
    %v63 = vld [vmem:[#allocation5 + $0xb0] sm:$0xff]
    %v64 = vld [vmem:[#allocation5 + $0xb8] sm:$0xff]
    %vm65 = vcmask 64512
    %v67 = vsel %vm65, %v40, 0
    %69 = vmatpush.msra.mxu0 0.0
    %70 = vmatpush.msra.mxu0 0.0
    %71 = vmatpush.msra.mxu0 0.0
    %72 = vmatpush.msra.mxu0 0.0
    %73 = vmatpush.msra.mxu0 0.0
    %74 = vmatpush.msra.mxu0 0.0
    %75 = vmatpush.msra.mxu0 0.0
    %76 = vmatpush.msra.mxu0 0.0
    %77 = vmatpush.msra.mxu0 0.0
    %78 = vmatpush.msra.mxu0 0.0
    %79 = vmatpush.msra.mxu0 0.0
    %80 = vmatpush.msra.mxu0 0.0
    %81 = vmatpush.msra.mxu0 0.0
    %82 = vmatpush.msra.mxu0 0.0
    %83 = vmatpush.msra.mxu0 0.0
    %84 = vmatpush.msra.mxu0 %v41
    %85 = vmatmul.f32.gmra.mxu0 %v67
    %v86 = vpop.f32.mrf.mxu0
    %v87 = vadd.f32 0.0, %v86
    %88 = vdwg.mxu0
    %89 = vmatpush.msra.mxu0 0.0
    %90 = vmatpush.msra.mxu0 0.0
    %91 = vmatpush.msra.mxu0 0.0
    %92 = vmatpush.msra.mxu0 0.0
    %93 = vmatpush.msra.mxu0 0.0
    %94 = vmatpush.msra.mxu0 0.0
    %95 = vmatpush.msra.mxu0 0.0
    %96 = vmatpush.msra.mxu0 0.0
    %97 = vmatpush.msra.mxu0 0.0
    %98 = vmatpush.msra.mxu0 0.0
    %99 = vmatpush.msra.mxu0 0.0
    %100 = vmatpush.msra.mxu0 0.0
    %101 = vmatpush.msra.mxu0 0.0
    %102 = vmatpush.msra.mxu0 0.0
    %103 = vmatpush.msra.mxu0 0.0
    %104 = vmatpush.msra.mxu0 %v42
    %105 = vmatmul.f32.gmra.mxu0 %v67
    %v106 = vpop.f32.mrf.mxu0
    %v107 = vadd.f32 0.0, %v106
    %108 = vdwg.mxu0
    %109 = vmatpush.msra.mxu0 0.0
    %110 = vmatpush.msra.mxu0 0.0
    %111 = vmatpush.msra.mxu0 0.0
    %112 = vmatpush.msra.mxu0 0.0
    %113 = vmatpush.msra.mxu0 0.0
    %114 = vmatpush.msra.mxu0 0.0
    %115 = vmatpush.msra.mxu0 0.0
    %116 = vmatpush.msra.mxu0 0.0
    %117 = vmatpush.msra.mxu0 0.0
    %118 = vmatpush.msra.mxu0 0.0
    %119 = vmatpush.msra.mxu0 0.0
    %120 = vmatpush.msra.mxu0 0.0
    %121 = vmatpush.msra.mxu0 0.0
    %122 = vmatpush.msra.mxu0 0.0
    %123 = vmatpush.msra.mxu0 0.0
    %124 = vmatpush.msra.mxu0 %v43
    %125 = vmatmul.f32.gmra.mxu0 %v67
    %v126 = vpop.f32.mrf.mxu0
    %v127 = vadd.f32 0.0, %v126
    %128 = vdwg.mxu0
    %129 = vmatpush.msra.mxu0 0.0
    %130 = vmatpush.msra.mxu0 0.0
    %131 = vmatpush.msra.mxu0 0.0
    %132 = vmatpush.msra.mxu0 0.0
    %133 = vmatpush.msra.mxu0 0.0
    %134 = vmatpush.msra.mxu0 0.0
    %135 = vmatpush.msra.mxu0 0.0
    %136 = vmatpush.msra.mxu0 0.0
    %137 = vmatpush.msra.mxu0 0.0
    %138 = vmatpush.msra.mxu0 0.0
    %139 = vmatpush.msra.mxu0 0.0
    %140 = vmatpush.msra.mxu0 0.0
    %141 = vmatpush.msra.mxu0 0.0
    %142 = vmatpush.msra.mxu0 0.0
    %143 = vmatpush.msra.mxu0 0.0
    %144 = vmatpush.msra.mxu0 %v44
    %145 = vmatmul.f32.gmra.mxu0 %v67
    %v146 = vpop.f32.mrf.mxu0
    %v147 = vadd.f32 0.0, %v146
    %148 = vdwg.mxu0
    %149 = vmatpush.msra.mxu0 0.0
    %150 = vmatpush.msra.mxu0 0.0
    %151 = vmatpush.msra.mxu0 0.0
    %152 = vmatpush.msra.mxu0 0.0
    %153 = vmatpush.msra.mxu0 0.0
    %154 = vmatpush.msra.mxu0 0.0
    %155 = vmatpush.msra.mxu0 0.0
    %156 = vmatpush.msra.mxu0 0.0
    %157 = vmatpush.msra.mxu0 0.0
    %158 = vmatpush.msra.mxu0 0.0
    %159 = vmatpush.msra.mxu0 0.0
    %160 = vmatpush.msra.mxu0 0.0
    %161 = vmatpush.msra.mxu0 0.0
    %162 = vmatpush.msra.mxu0 0.0
    %163 = vmatpush.msra.mxu0 0.0
    %164 = vmatpush.msra.mxu0 %v45
    %165 = vmatmul.f32.gmra.mxu0 %v67
    %v166 = vpop.f32.mrf.mxu0
    %v167 = vadd.f32 0.0, %v166
    %168 = vdwg.mxu0
    %169 = vmatpush.msra.mxu0 0.0
    %170 = vmatpush.msra.mxu0 0.0
    %171 = vmatpush.msra.mxu0 0.0
    %172 = vmatpush.msra.mxu0 0.0
    %173 = vmatpush.msra.mxu0 0.0
    %174 = vmatpush.msra.mxu0 0.0
    %175 = vmatpush.msra.mxu0 0.0
    %176 = vmatpush.msra.mxu0 0.0
    %177 = vmatpush.msra.mxu0 0.0
    %178 = vmatpush.msra.mxu0 0.0
    %179 = vmatpush.msra.mxu0 0.0
    %180 = vmatpush.msra.mxu0 0.0
    %181 = vmatpush.msra.mxu0 0.0
    %182 = vmatpush.msra.mxu0 0.0
    %183 = vmatpush.msra.mxu0 0.0
    %184 = vmatpush.msra.mxu0 %v46
    %185 = vmatmul.f32.gmra.mxu0 %v67
    %v186 = vpop.f32.mrf.mxu0
    %v187 = vadd.f32 0.0, %v186
    %188 = vdwg.mxu0
    %189 = vmatpush.msra.mxu0 0.0
    %190 = vmatpush.msra.mxu0 0.0
    %191 = vmatpush.msra.mxu0 0.0
    %192 = vmatpush.msra.mxu0 0.0
    %193 = vmatpush.msra.mxu0 0.0
    %194 = vmatpush.msra.mxu0 0.0
    %195 = vmatpush.msra.mxu0 0.0
    %196 = vmatpush.msra.mxu0 0.0
    %197 = vmatpush.msra.mxu0 0.0
    %198 = vmatpush.msra.mxu0 0.0
    %199 = vmatpush.msra.mxu0 0.0
    %200 = vmatpush.msra.mxu0 0.0
    %201 = vmatpush.msra.mxu0 0.0
    %202 = vmatpush.msra.mxu0 0.0
    %203 = vmatpush.msra.mxu0 0.0
    %204 = vmatpush.msra.mxu0 %v47
    %205 = vmatmul.f32.gmra.mxu0 %v67
    %v206 = vpop.f32.mrf.mxu0
    %v207 = vadd.f32 0.0, %v206
    %208 = vdwg.mxu0
    %209 = vmatpush.msra.mxu0 0.0
    %210 = vmatpush.msra.mxu0 0.0
    %211 = vmatpush.msra.mxu0 0.0
    %212 = vmatpush.msra.mxu0 0.0
    %213 = vmatpush.msra.mxu0 0.0
    %214 = vmatpush.msra.mxu0 0.0
    %215 = vmatpush.msra.mxu0 0.0
    %216 = vmatpush.msra.mxu0 0.0
    %217 = vmatpush.msra.mxu0 0.0
    %218 = vmatpush.msra.mxu0 0.0
    %219 = vmatpush.msra.mxu0 0.0
    %220 = vmatpush.msra.mxu0 0.0
    %221 = vmatpush.msra.mxu0 0.0
    %222 = vmatpush.msra.mxu0 0.0
    %223 = vmatpush.msra.mxu0 0.0
    %224 = vmatpush.msra.mxu0 %v48
    %225 = vmatmul.f32.gmra.mxu0 %v67
    %v226 = vpop.f32.mrf.mxu0
    %v227 = vadd.f32 0.0, %v226
    %228 = vdwg.mxu0
    %229 = vmatpush.msra.mxu0 0.0
    %230 = vmatpush.msra.mxu0 0.0
    %231 = vmatpush.msra.mxu0 0.0
    %232 = vmatpush.msra.mxu0 0.0
    %233 = vmatpush.msra.mxu0 0.0
    %234 = vmatpush.msra.mxu0 0.0
    %235 = vmatpush.msra.mxu0 0.0
    %236 = vmatpush.msra.mxu0 0.0
    %237 = vmatpush.msra.mxu0 0.0
    %238 = vmatpush.msra.mxu0 0.0
    %239 = vmatpush.msra.mxu0 0.0
    %240 = vmatpush.msra.mxu0 0.0
    %241 = vmatpush.msra.mxu0 0.0
    %242 = vmatpush.msra.mxu0 0.0
    %243 = vmatpush.msra.mxu0 0.0
    %244 = vmatpush.msra.mxu0 %v49
    %245 = vmatmul.f32.gmra.mxu0 %v67
    %v246 = vpop.f32.mrf.mxu0
    %v247 = vadd.f32 0.0, %v246
    %248 = vdwg.mxu0
    %249 = vmatpush.msra.mxu0 0.0
    %250 = vmatpush.msra.mxu0 0.0
    %251 = vmatpush.msra.mxu0 0.0
    %252 = vmatpush.msra.mxu0 0.0
    %253 = vmatpush.msra.mxu0 0.0
    %254 = vmatpush.msra.mxu0 0.0
    %255 = vmatpush.msra.mxu0 0.0
    %256 = vmatpush.msra.mxu0 0.0
    %257 = vmatpush.msra.mxu0 0.0
    %258 = vmatpush.msra.mxu0 0.0
    %259 = vmatpush.msra.mxu0 0.0
    %260 = vmatpush.msra.mxu0 0.0
    %261 = vmatpush.msra.mxu0 0.0
    %262 = vmatpush.msra.mxu0 0.0
    %263 = vmatpush.msra.mxu0 0.0
    %264 = vmatpush.msra.mxu0 %v50
    %265 = vmatmul.f32.gmra.mxu0 %v67
    %v266 = vpop.f32.mrf.mxu0
    %v267 = vadd.f32 0.0, %v266
    %268 = vdwg.mxu0
    %269 = vmatpush.msra.mxu0 0.0
    %270 = vmatpush.msra.mxu0 0.0
    %271 = vmatpush.msra.mxu0 0.0
    %272 = vmatpush.msra.mxu0 0.0
    %273 = vmatpush.msra.mxu0 0.0
    %274 = vmatpush.msra.mxu0 0.0
    %275 = vmatpush.msra.mxu0 0.0
    %276 = vmatpush.msra.mxu0 0.0
    %277 = vmatpush.msra.mxu0 0.0
    %278 = vmatpush.msra.mxu0 0.0
    %279 = vmatpush.msra.mxu0 0.0
    %280 = vmatpush.msra.mxu0 0.0
    %281 = vmatpush.msra.mxu0 0.0
    %282 = vmatpush.msra.mxu0 0.0
    %283 = vmatpush.msra.mxu0 0.0
    %284 = vmatpush.msra.mxu0 %v51
    %285 = vmatmul.f32.gmra.mxu0 %v67
    %v286 = vpop.f32.mrf.mxu0
    %v287 = vadd.f32 0.0, %v286
    %288 = vdwg.mxu0
    %289 = vmatpush.msra.mxu0 0.0
    %290 = vmatpush.msra.mxu0 0.0
    %291 = vmatpush.msra.mxu0 0.0
    %292 = vmatpush.msra.mxu0 0.0
    %293 = vmatpush.msra.mxu0 0.0
    %294 = vmatpush.msra.mxu0 0.0
    %295 = vmatpush.msra.mxu0 0.0
    %296 = vmatpush.msra.mxu0 0.0
    %297 = vmatpush.msra.mxu0 0.0
    %298 = vmatpush.msra.mxu0 0.0
    %299 = vmatpush.msra.mxu0 0.0
    %300 = vmatpush.msra.mxu0 0.0
    %301 = vmatpush.msra.mxu0 0.0
    %302 = vmatpush.msra.mxu0 0.0
    %303 = vmatpush.msra.mxu0 0.0
    %304 = vmatpush.msra.mxu0 %v52
    %305 = vmatmul.f32.gmra.mxu0 %v67
    %v306 = vpop.f32.mrf.mxu0
    %v307 = vadd.f32 0.0, %v306
    %308 = vdwg.mxu0
    %309 = vmatpush.msra.mxu0 0.0
    %310 = vmatpush.msra.mxu0 0.0
    %311 = vmatpush.msra.mxu0 0.0
    %312 = vmatpush.msra.mxu0 0.0
    %313 = vmatpush.msra.mxu0 0.0
    %314 = vmatpush.msra.mxu0 0.0
    %315 = vmatpush.msra.mxu0 0.0
    %316 = vmatpush.msra.mxu0 0.0
    %317 = vmatpush.msra.mxu0 0.0
    %318 = vmatpush.msra.mxu0 0.0
    %319 = vmatpush.msra.mxu0 0.0
    %320 = vmatpush.msra.mxu0 0.0
    %321 = vmatpush.msra.mxu0 0.0
    %322 = vmatpush.msra.mxu0 0.0
    %323 = vmatpush.msra.mxu0 0.0
    %324 = vmatpush.msra.mxu0 %v53
    %325 = vmatmul.f32.gmra.mxu0 %v67
    %v326 = vpop.f32.mrf.mxu0
    %v327 = vadd.f32 0.0, %v326
    %328 = vdwg.mxu0
    %329 = vmatpush.msra.mxu0 0.0
    %330 = vmatpush.msra.mxu0 0.0
    %331 = vmatpush.msra.mxu0 0.0
    %332 = vmatpush.msra.mxu0 0.0
    %333 = vmatpush.msra.mxu0 0.0
    %334 = vmatpush.msra.mxu0 0.0
    %335 = vmatpush.msra.mxu0 0.0
    %336 = vmatpush.msra.mxu0 0.0
    %337 = vmatpush.msra.mxu0 0.0
    %338 = vmatpush.msra.mxu0 0.0
    %339 = vmatpush.msra.mxu0 0.0
    %340 = vmatpush.msra.mxu0 0.0
    %341 = vmatpush.msra.mxu0 0.0
    %342 = vmatpush.msra.mxu0 0.0
    %343 = vmatpush.msra.mxu0 0.0
    %344 = vmatpush.msra.mxu0 %v54
    %345 = vmatmul.f32.gmra.mxu0 %v67
    %v346 = vpop.f32.mrf.mxu0
    %v347 = vadd.f32 0.0, %v346
    %348 = vdwg.mxu0
    %349 = vmatpush.msra.mxu0 0.0
    %350 = vmatpush.msra.mxu0 0.0
    %351 = vmatpush.msra.mxu0 0.0
    %352 = vmatpush.msra.mxu0 0.0
    %353 = vmatpush.msra.mxu0 0.0
    %354 = vmatpush.msra.mxu0 0.0
    %355 = vmatpush.msra.mxu0 0.0
    %356 = vmatpush.msra.mxu0 0.0
    %357 = vmatpush.msra.mxu0 0.0
    %358 = vmatpush.msra.mxu0 0.0
    %359 = vmatpush.msra.mxu0 0.0
    %360 = vmatpush.msra.mxu0 0.0
    %361 = vmatpush.msra.mxu0 0.0
    %362 = vmatpush.msra.mxu0 0.0
    %363 = vmatpush.msra.mxu0 0.0
    %364 = vmatpush.msra.mxu0 %v55
    %365 = vmatmul.f32.gmra.mxu0 %v67
    %v366 = vpop.f32.mrf.mxu0
    %v367 = vadd.f32 0.0, %v366
    %368 = vdwg.mxu0
    %369 = vmatpush.msra.mxu0 0.0
    %370 = vmatpush.msra.mxu0 0.0
    %371 = vmatpush.msra.mxu0 0.0
    %372 = vmatpush.msra.mxu0 0.0
    %373 = vmatpush.msra.mxu0 0.0
    %374 = vmatpush.msra.mxu0 0.0
    %375 = vmatpush.msra.mxu0 0.0
    %376 = vmatpush.msra.mxu0 0.0
    %377 = vmatpush.msra.mxu0 0.0
    %378 = vmatpush.msra.mxu0 0.0
    %379 = vmatpush.msra.mxu0 0.0
    %380 = vmatpush.msra.mxu0 0.0
    %381 = vmatpush.msra.mxu0 0.0
    %382 = vmatpush.msra.mxu0 0.0
    %383 = vmatpush.msra.mxu0 0.0
    %384 = vmatpush.msra.mxu0 %v56
    %385 = vmatmul.f32.gmra.mxu0 %v67
    %v386 = vpop.f32.mrf.mxu0
    %v387 = vadd.f32 0.0, %v386
    %388 = vdwg.mxu0
    %389 = vmatpush.msra.mxu0 0.0
    %390 = vmatpush.msra.mxu0 0.0
    %391 = vmatpush.msra.mxu0 0.0
    %392 = vmatpush.msra.mxu0 0.0
    %393 = vmatpush.msra.mxu0 0.0
    %394 = vmatpush.msra.mxu0 0.0
    %395 = vmatpush.msra.mxu0 0.0
    %396 = vmatpush.msra.mxu0 0.0
    %397 = vmatpush.msra.mxu0 0.0
    %398 = vmatpush.msra.mxu0 0.0
    %399 = vmatpush.msra.mxu0 0.0
    %400 = vmatpush.msra.mxu0 0.0
    %401 = vmatpush.msra.mxu0 0.0
    %402 = vmatpush.msra.mxu0 0.0
    %403 = vmatpush.msra.mxu0 0.0
    %404 = vmatpush.msra.mxu0 %v57
    %405 = vmatmul.f32.gmra.mxu0 %v67
    %v406 = vpop.f32.mrf.mxu0
    %v407 = vadd.f32 0.0, %v406
    %408 = vdwg.mxu0
    %409 = vmatpush.msra.mxu0 0.0
    %410 = vmatpush.msra.mxu0 0.0
    %411 = vmatpush.msra.mxu0 0.0
    %412 = vmatpush.msra.mxu0 0.0
    %413 = vmatpush.msra.mxu0 0.0
    %414 = vmatpush.msra.mxu0 0.0
    %415 = vmatpush.msra.mxu0 0.0
    %416 = vmatpush.msra.mxu0 0.0
    %417 = vmatpush.msra.mxu0 0.0
    %418 = vmatpush.msra.mxu0 0.0
    %419 = vmatpush.msra.mxu0 0.0
    %420 = vmatpush.msra.mxu0 0.0
    %421 = vmatpush.msra.mxu0 0.0
    %422 = vmatpush.msra.mxu0 0.0
    %423 = vmatpush.msra.mxu0 0.0
    %424 = vmatpush.msra.mxu0 %v58
    %425 = vmatmul.f32.gmra.mxu0 %v67
    %v426 = vpop.f32.mrf.mxu0
    %v427 = vadd.f32 0.0, %v426
    %428 = vdwg.mxu0
    %429 = vmatpush.msra.mxu0 0.0
    %430 = vmatpush.msra.mxu0 0.0
    %431 = vmatpush.msra.mxu0 0.0
    %432 = vmatpush.msra.mxu0 0.0
    %433 = vmatpush.msra.mxu0 0.0
    %434 = vmatpush.msra.mxu0 0.0
    %435 = vmatpush.msra.mxu0 0.0
    %436 = vmatpush.msra.mxu0 0.0
    %437 = vmatpush.msra.mxu0 0.0
    %438 = vmatpush.msra.mxu0 0.0
    %439 = vmatpush.msra.mxu0 0.0
    %440 = vmatpush.msra.mxu0 0.0
    %441 = vmatpush.msra.mxu0 0.0
    %442 = vmatpush.msra.mxu0 0.0
    %443 = vmatpush.msra.mxu0 0.0
    %444 = vmatpush.msra.mxu0 %v59
    %445 = vmatmul.f32.gmra.mxu0 %v67
    %v446 = vpop.f32.mrf.mxu0
    %v447 = vadd.f32 0.0, %v446
    %448 = vdwg.mxu0
    %449 = vmatpush.msra.mxu0 0.0
    %450 = vmatpush.msra.mxu0 0.0
    %451 = vmatpush.msra.mxu0 0.0
    %452 = vmatpush.msra.mxu0 0.0
    %453 = vmatpush.msra.mxu0 0.0
    %454 = vmatpush.msra.mxu0 0.0
    %455 = vmatpush.msra.mxu0 0.0
    %456 = vmatpush.msra.mxu0 0.0
    %457 = vmatpush.msra.mxu0 0.0
    %458 = vmatpush.msra.mxu0 0.0
    %459 = vmatpush.msra.mxu0 0.0
    %460 = vmatpush.msra.mxu0 0.0
    %461 = vmatpush.msra.mxu0 0.0
    %462 = vmatpush.msra.mxu0 0.0
    %463 = vmatpush.msra.mxu0 0.0
    %464 = vmatpush.msra.mxu0 %v60
    %465 = vmatmul.f32.gmra.mxu0 %v67
    %v466 = vpop.f32.mrf.mxu0
    %v467 = vadd.f32 0.0, %v466
    %468 = vdwg.mxu0
    %469 = vmatpush.msra.mxu0 0.0
    %470 = vmatpush.msra.mxu0 0.0
    %471 = vmatpush.msra.mxu0 0.0
    %472 = vmatpush.msra.mxu0 0.0
    %473 = vmatpush.msra.mxu0 0.0
    %474 = vmatpush.msra.mxu0 0.0
    %475 = vmatpush.msra.mxu0 0.0
    %476 = vmatpush.msra.mxu0 0.0
    %477 = vmatpush.msra.mxu0 0.0
    %478 = vmatpush.msra.mxu0 0.0
    %479 = vmatpush.msra.mxu0 0.0
    %480 = vmatpush.msra.mxu0 0.0
    %481 = vmatpush.msra.mxu0 0.0
    %482 = vmatpush.msra.mxu0 0.0
    %483 = vmatpush.msra.mxu0 0.0
    %484 = vmatpush.msra.mxu0 %v61
    %485 = vmatmul.f32.gmra.mxu0 %v67
    %v486 = vpop.f32.mrf.mxu0
    %v487 = vadd.f32 0.0, %v486
    %488 = vdwg.mxu0
    %489 = vmatpush.msra.mxu0 0.0
    %490 = vmatpush.msra.mxu0 0.0
    %491 = vmatpush.msra.mxu0 0.0
    %492 = vmatpush.msra.mxu0 0.0
    %493 = vmatpush.msra.mxu0 0.0
    %494 = vmatpush.msra.mxu0 0.0
    %495 = vmatpush.msra.mxu0 0.0
    %496 = vmatpush.msra.mxu0 0.0
    %497 = vmatpush.msra.mxu0 0.0
    %498 = vmatpush.msra.mxu0 0.0
    %499 = vmatpush.msra.mxu0 0.0
    %500 = vmatpush.msra.mxu0 0.0
    %501 = vmatpush.msra.mxu0 0.0
    %502 = vmatpush.msra.mxu0 0.0
    %503 = vmatpush.msra.mxu0 0.0
    %504 = vmatpush.msra.mxu0 %v62
    %505 = vmatmul.f32.gmra.mxu0 %v67
    %v506 = vpop.f32.mrf.mxu0
    %v507 = vadd.f32 0.0, %v506
    %508 = vdwg.mxu0
    %509 = vmatpush.msra.mxu0 0.0
    %510 = vmatpush.msra.mxu0 0.0
    %511 = vmatpush.msra.mxu0 0.0
    %512 = vmatpush.msra.mxu0 0.0
    %513 = vmatpush.msra.mxu0 0.0
    %514 = vmatpush.msra.mxu0 0.0
    %515 = vmatpush.msra.mxu0 0.0
    %516 = vmatpush.msra.mxu0 0.0
    %517 = vmatpush.msra.mxu0 0.0
    %518 = vmatpush.msra.mxu0 0.0
    %519 = vmatpush.msra.mxu0 0.0
    %520 = vmatpush.msra.mxu0 0.0
    %521 = vmatpush.msra.mxu0 0.0
    %522 = vmatpush.msra.mxu0 0.0
    %523 = vmatpush.msra.mxu0 0.0
    %524 = vmatpush.msra.mxu0 %v63
    %525 = vmatmul.f32.gmra.mxu0 %v67
    %v526 = vpop.f32.mrf.mxu0
    %v527 = vadd.f32 0.0, %v526
    %528 = vdwg.mxu0
    %529 = vmatpush.msra.mxu0 0.0
    %530 = vmatpush.msra.mxu0 0.0
    %531 = vmatpush.msra.mxu0 0.0
    %532 = vmatpush.msra.mxu0 0.0
    %533 = vmatpush.msra.mxu0 0.0
    %534 = vmatpush.msra.mxu0 0.0
    %535 = vmatpush.msra.mxu0 0.0
    %536 = vmatpush.msra.mxu0 0.0
    %537 = vmatpush.msra.mxu0 0.0
    %538 = vmatpush.msra.mxu0 0.0
    %539 = vmatpush.msra.mxu0 0.0
    %540 = vmatpush.msra.mxu0 0.0
    %541 = vmatpush.msra.mxu0 0.0
    %542 = vmatpush.msra.mxu0 0.0
    %543 = vmatpush.msra.mxu0 0.0
    %544 = vmatpush.msra.mxu0 %v64
    %545 = vmatmul.f32.gmra.mxu0 %v67
    %v546 = vpop.f32.mrf.mxu0
    %v547 = vadd.f32 0.0, %v546
    %548 = vdwg.mxu0
    %v573 = vrot.slane %v107, 7
    %v574 = vrot.slane %v127, 6
    %v575 = vrot.slane %v147, 5
    %v576 = vrot.slane %v167, 4
    %v577 = vrot.slane %v187, 3
    %v578 = vrot.slane %v207, 2
    %v579 = vrot.slane %v227, 1
    %v580 = vrot.slane %v267, 7
    %v581 = vrot.slane %v287, 6
    %v582 = vrot.slane %v307, 5
    %v583 = vrot.slane %v327, 4
    %v584 = vrot.slane %v347, 3
    %v585 = vrot.slane %v367, 2
    %v586 = vrot.slane %v387, 1
    %v587 = vrot.slane %v427, 7
    %v588 = vrot.slane %v447, 6
    %v589 = vrot.slane %v467, 5
    %v590 = vrot.slane %v487, 4
    %v591 = vrot.slane %v507, 3
    %v592 = vrot.slane %v527, 2
    %v593 = vrot.slane %v547, 1
    %vm594 = vcmask 1040384
    %v595 = vsel %vm594, %v87, %v573
    %vm596 = vcmask 1042434
    %v597 = vsel %vm596, %v574, %v575
    %vm598 = vcmask 1041408
    %v599 = vsel %vm598, %v595, %v597
    %vm600 = vcmask 1044484
    %v601 = vsel %vm600, %v576, %v577
    %vm602 = vcmask 1046534
    %v603 = vsel %vm602, %v578, %v579
    %vm604 = vcmask 1045508
    %v605 = vsel %vm604, %v601, %v603
    %vm606 = vcmask 1043456
    %v607 = vsel %vm606, %v599, %v605
    %v608 = vsel %vm594, %v247, %v580
    %v609 = vsel %vm596, %v581, %v582
    %v610 = vsel %vm598, %v608, %v609
    %v611 = vsel %vm600, %v583, %v584
    %v612 = vsel %vm602, %v585, %v586
    %v613 = vsel %vm604, %v611, %v612
    %v614 = vsel %vm606, %v610, %v613
    %v615 = vsel %vm594, %v407, %v587
    %v616 = vsel %vm596, %v588, %v589
    %v617 = vsel %vm598, %v615, %v616
    %v618 = vsel %vm600, %v590, %v591
    %v619 = vsel %vm602, %v592, %v593
    %v620 = vsel %vm604, %v618, %v619
    %v621 = vsel %vm606, %v617, %v620
    %625 = vst [vmem:[#allocation7] sm:$0xff] %v607
    %626 = vst [vmem:[#allocation7 + $0x8] sm:$0xff] %v614
    %627 = vst [vmem:[#allocation7 + $0x10] sm:$0xff] %v621
    // Predicated region
    $region18: #{tpu_custom_call.1} parent=1 // pred_check
      _
    $region19: #{tpu_custom_call.1} parent=1 // pred_check_branch
      %629 = sbr.rel (0) target = $region21
    $region20: #{tpu_custom_call.1} parent=1 // pred_region
      %631 = vsyncadd [#allocation4], 0
      %s633 = sshll.u32 [#allocation7], 4
      %s634 = int_to_ptr.vmem [resolvable:$true] %s633
      %s635 = sshll.u32 %s2, 4
      %s636 = int_to_ptr.hbm [resolvable:$true] %s635
      %638 = dma.vmem_to_hbm [thread:$0]  %s634, 384, %s636, [#allocation4]
    $region21: #{tpu_custom_call.1} parent=1 // pred_fallthru
      _
    // Predicated region
    $region22: #{tpu_custom_call.1} parent=1 // pred_check
      _
    $region23: #{tpu_custom_call.1} parent=1 // pred_check_branch
      %640 = sbr.rel (0) target = $region25
    $region24: #{tpu_custom_call.1} parent=1 // pred_region
      %642 = dma.done [#allocation4], 384
    $region25: #{tpu_custom_call.1} parent=1 // pred_fallthru
      _
    %643 = vsyncpa [#allocation3], 1
    %644 = vsyncpa [#allocation6], 1
    %645 = vsyncpa [#allocation4], 1

</llo_original>
